<compile_context>
chip_gen: v7x
topology: tpu7x:2x2x1
jax: 0.10.0
libtpu: 0.0.40
codegen_flags: <defaults>
</compile_context>

<pallas_src>
import copy
import functools
import math

import jax
import jax.numpy as jnp
from jax import lax
from jax.experimental import pallas as pl
from jax.experimental.pallas import tpu as pltpu

VMEM_LIMIT_BYTES = 32 * 1024 * 1024   # safe request on v5e/v6e (128 MiB) and v7x (64 MiB)


def _row_tile(n, preferred=256):
    """Pick a row tile that satisfies the (8, 128) block constraint."""
    t = min(preferred, n)
    if t != n and t % 8 != 0:
        t = n
    return t


def _head_group(bh):
    """How many (batch*head) slices to process per attention grid step."""
    for g in (8, 4, 2, 1):
        if bh % g == 0:
            return g
    return 1


# ----------------------- Q/K/V projection (head-split) -----------------------

def _head_proj_kernel(x_ref, w_ref, b_ref, o_ref):
    # x: (1, TL, Cin)   w: (1, Cin, D)   b: (1, 1, D)   o: (1, 1, TL, D)
    y = jnp.dot(x_ref[0], w_ref[0], preferred_element_type=jnp.float32)
    y = y + b_ref[0].astype(jnp.float32)
    o_ref[0, 0] = y.astype(o_ref.dtype)


def head_projection(x, w_heads, b_heads, *, row_tile=256):
    """x: (B, L, C) -> (B, H, L, D) using pre-transposed per-head weights.

    The head split is written directly by the output BlockSpec (no HBM
    transpose).  The head axis is innermost so the x row-tile is DMA'd once and
    reused for every head.
    """
    B, L, C = x.shape
    H, _, D = w_heads.shape
    tl = _row_tile(L, row_tile)
    grid = (B, pl.cdiv(L, tl), H)
    return pl.pallas_call(
        _head_proj_kernel,
        out_shape=jax.ShapeDtypeStruct((B, H, L, D), x.dtype),
        grid=grid,
        in_specs=[
            pl.BlockSpec((1, tl, C), lambda b, l, h: (b, l, 0)),
            pl.BlockSpec((1, C, D), lambda b, l, h: (h, 0, 0)),
            pl.BlockSpec((1, 1, D), lambda b, l, h: (h, 0, 0)),
        ],
        out_specs=pl.BlockSpec((1, 1, tl, D), lambda b, l, h: (b, h, l, 0)),
        compiler_params=pltpu.CompilerParams(
            dimension_semantics=("parallel", "parallel", "parallel"),
            vmem_limit_bytes=VMEM_LIMIT_BYTES),
    )(x, w_heads, b_heads)


# --------------------- flash attention (online softmax) ----------------------

def _flash_attn_kernel(q_ref, k_ref, v_ref, o_ref, m_sc, l_sc, acc_sc, *,
                       kv_len, kv_tile, mask_kv):
    kv = pl.program_id(2)

    @pl.when(kv == 0)
    def _init():
        m_sc[...] = jnp.full(m_sc.shape, -jnp.inf, dtype=m_sc.dtype)
        l_sc[...] = jnp.zeros(l_sc.shape, dtype=l_sc.dtype)
        acc_sc[...] = jnp.zeros(acc_sc.shape, dtype=acc_sc.dtype)

    # Operands stay in their storage dtype (bf16 on v6e/v7x feeds the MXU
    # natively); accumulation and all softmax statistics are f32.
    q = q_ref[...]          # (G, tq, D)  (1/sqrt(D) already folded into Wq)
    k = k_ref[...]          # (G, tk, D)
    v = v_ref[...]          # (G, tk, D)

    s = jnp.einsum('gqd,gkd->gqk', q, k, preferred_element_type=jnp.float32)
    if mask_kv:  # only emitted when S % tk != 0
        col = lax.broadcasted_iota(jnp.int32, s.shape, 2) + kv * kv_tile
        s = jnp.where(col < kv_len, s, -jnp.inf)

    m_prev = m_sc[...]
    m_new = jnp.maximum(m_prev, jnp.max(s, axis=-1, keepdims=True))
    alpha = jnp.exp(m_prev - m_new)
    p = jnp.exp(s - m_new)
    l_sc[...] = alpha * l_sc[...] + jnp.sum(p, axis=-1, keepdims=True)
    acc_sc[...] = alpha * acc_sc[...] + jnp.einsum(
        'gqk,gkd->gqd', p.astype(v.dtype), v, preferred_element_type=jnp.float32)
    m_sc[...] = m_new

    @pl.when(kv == pl.num_programs(2) - 1)
    def _finalize():
        inv = pl.reciprocal(l_sc[...], approx=False)
        o_ref[...] = (acc_sc[...] * inv).astype(o_ref.dtype)


def flash_attention(q, k, v, *, q_tile=256, kv_tile=256):
    """q: (BH, T, D), k/v: (BH, S, D) -> (BH, T, D); exact softmax attention."""
    BH, T, D = q.shape
    S = k.shape[1]
    gh = _head_group(BH)
    tq = _row_tile(T, q_tile)
    tk = _row_tile(S, kv_tile)
    mask_kv = (S % tk) != 0
    grid = (BH // gh, pl.cdiv(T, tq), pl.cdiv(S, tk))
    kern = functools.partial(_flash_attn_kernel, kv_len=S, kv_tile=tk,
                             mask_kv=mask_kv)
    return pl.pallas_call(
        kern,
        out_shape=jax.ShapeDtypeStruct((BH, T, D), q.dtype),
        grid=grid,
        in_specs=[
            pl.BlockSpec((gh, tq, D), lambda b, qi, ki: (b, qi, 0)),
            pl.BlockSpec((gh, tk, D), lambda b, qi, ki: (b, ki, 0)),
            pl.BlockSpec((gh, tk, D), lambda b, qi, ki: (b, ki, 0)),
        ],
        out_specs=pl.BlockSpec((gh, tq, D), lambda b, qi, ki: (b, qi, 0)),
        scratch_shapes=[
            pltpu.VMEM((gh, tq, 1), jnp.float32),   # running max m
            pltpu.VMEM((gh, tq, 1), jnp.float32),   # running denom l
            pltpu.VMEM((gh, tq, D), jnp.float32),   # running numerator acc
        ],
        compiler_params=pltpu.CompilerParams(
            dimension_semantics=("parallel", "parallel", "arbitrary"),
            vmem_limit_bytes=VMEM_LIMIT_BYTES),
    )(q, k, v)


# ------------------- output projection (head-merge fused) --------------------

def _out_proj_kernel(a_ref, w_ref, b_ref, o_ref, acc_ref):
    # a: (1, 1, TL, D)  w: (1, D, C)  b: (1, C)  o: (1, TL, C)  acc: (TL, C) f32
    h = pl.program_id(2)

    @pl.when(h == 0)
    def _init():
        acc_ref[...] = jnp.zeros(acc_ref.shape, jnp.float32) + \
            b_ref[...].astype(jnp.float32)

    acc_ref[...] += jnp.dot(a_ref[0, 0], w_ref[0],
                            preferred_element_type=jnp.float32)

    @pl.when(h == pl.num_programs(2) - 1)
    def _finalize():
        o_ref[0] = acc_ref[...].astype(o_ref.dtype)


def output_projection(attn, wo_heads, bo_row, *, row_tile=256):
    """(B, H, T, D) x (H, D, C) -> (B, T, C); head axis reduced on the grid."""
    B, H, T, D = attn.shape
    C = wo_heads.shape[-1]
    tl = _row_tile(T, row_tile)
    grid = (B, pl.cdiv(T, tl), H)
    return pl.pallas_call(
        _out_proj_kernel,
        out_shape=jax.ShapeDtypeStruct((B, T, C), attn.dtype),
        grid=grid,
        in_specs=[
            pl.BlockSpec((1, 1, tl, D), lambda b, t, h: (b, h, t, 0)),
            pl.BlockSpec((1, D, C), lambda b, t, h: (h, 0, 0)),
            pl.BlockSpec((1, C), lambda b, t, h: (0, 0)),
        ],
        out_specs=pl.BlockSpec((1, tl, C), lambda b, t, h: (b, t, 0)),
        scratch_shapes=[pltpu.VMEM((tl, C), jnp.float32)],
        compiler_params=pltpu.CompilerParams(
            dimension_semantics=("parallel", "parallel", "arbitrary"),
            vmem_limit_bytes=VMEM_LIMIT_BYTES),
    )(attn, wo_heads, bo_row)


# --------------------------- module-level wrapper ----------------------------

class MultiheadAttentionPallas:
    """Forward-pass equivalent of MultiheadAttention(embed_dim, num_heads, bias=True)."""

    _PREPARED = ("wq_h", "bq_h", "wk_h", "bk_h", "wv_h", "bv_h", "wo_h", "bo_row")

    def __init__(self, embed_dim: int, num_heads: int, rng):
        assert embed_dim % num_heads == 0
        self.embed_dim = embed_dim
        self.num_heads = num_heads
        self.head_dim = embed_dim // num_heads
        H, D, C = num_heads, self.head_dim, embed_dim

        bound = 1.0 / math.sqrt(embed_dim)   # torch nn.Linear default init bound
        keys = jax.random.split(rng, 8)

        def _w(k):
            return jax.random.uniform(k, (C, C), minval=-bound, maxval=bound,
                                      dtype=jnp.float32)

        def _b(k):
            return jax.random.uniform(k, (C,), minval=-bound, maxval=bound,
                                      dtype=jnp.float32)

        # raw parameters in PyTorch nn.Linear layout (used by the reference)
        self.wq, self.bq = _w(keys[0]), _b(keys[1])
        self.wk, self.bk = _w(keys[2]), _b(keys[3])
        self.wv, self.bv = _w(keys[4]), _b(keys[5])
        self.wo, self.bo = _w(keys[6]), _b(keys[7])

        scale = 1.0 / math.sqrt(D)   # folded into the Q projection at init

        def split_w(w, s=1.0):
            # torch (Cout, Cin) -> per-head, pre-transposed (H, Cin, D)
            return (w * s).reshape(H, D, C).transpose(0, 2, 1)

        def split_b(b, s=1.0):
            return (b * s).reshape(H, 1, D)

        self.wq_h, self.bq_h = split_w(self.wq, scale), split_b(self.bq, scale)
        self.wk_h, self.bk_h = split_w(self.wk), split_b(self.bk)
        self.wv_h, self.bv_h = split_w(self.wv), split_b(self.bv)
        # output weight rearranged to (H, D, C) so the kernel reduces over heads
        self.wo_h = self.wo.T.reshape(H, D, C)
        self.bo_row = self.bo.reshape(1, C)

    def astype(self, dtype):
        """Return a copy whose kernel-side parameters are cast (e.g. bf16)."""
        new = copy.copy(self)
        for name in self._PREPARED:
            setattr(new, name, getattr(self, name).astype(dtype))
        return new

    def __call__(self, query, key, value):
        # query: (B, T, C), key/value: (B, S, C)
        B, T, C = query.shape
        S = key.shape[1]
        H, D = self.num_heads, self.head_dim

        q = head_projection(query, self.wq_h, self.bq_h)   # (B, H, T, D), pre-scaled
        k = head_projection(key, self.wk_h, self.bk_h)     # (B, H, S, D)
        v = head_projection(value, self.wv_h, self.bv_h)   # (B, H, S, D)

        attn = flash_attention(q.reshape(B * H, T, D),
                               k.reshape(B * H, S, D),
                               v.reshape(B * H, S, D))      # (B*H, T, D)
        attn = attn.reshape(B, H, T, D)                     # free reshape, no copy
        return output_projection(attn, self.wo_h, self.bo_row)   # (B, T, C)


# --------------------------------- reference ---------------------------------

def _reference(m, query, key, value):
    B, T, C = query.shape
    S = key.shape[1]
    H, D = m.num_heads, m.head_dim

    def proj(x, w, b, L):
        y = x.reshape(-1, C) @ w.T + b
        return y.reshape(B, L, H, D).transpose(0, 2, 1, 3)

    q = proj(query, m.wq, m.bq, T) / math.sqrt(D)
    k = proj(key, m.wk, m.bk, S)
    v = proj(value, m.wv, m.bv, S)
    s = jnp.einsum('bhqd,bhkd->bhqk', q, k)
    p = jax.nn.softmax(s, axis=-1)
    o = jnp.einsum('bhqk,bhkd->bhqd', p, v)
    o = o.transpose(0, 2, 1, 3).reshape(B * T, C)
    return (o @ m.wo.T + m.bo).reshape(B, T, C)


# ------------------------------------ main ------------------------------------

if __name__ == "__main__":
    B, T, S, C, H = 2, 8, 8, 32, 4

    root = jax.random.PRNGKey(0)
    k_mod, k_q, k_k, k_v = jax.random.split(root, 4)

    mha = MultiheadAttentionPallas(embed_dim=C, num_heads=H, rng=k_mod)

    query = jax.random.normal(k_q, (B, T, C), dtype=jnp.float32)
    key = jax.random.normal(k_k, (B, S, C), dtype=jnp.float32)
    value = jax.random.normal(k_v, (B, S, C), dtype=jnp.float32)

    # f32 path: tight correctness check against the pure-jnp reference.
    out = jax.block_until_ready(mha(query, key, value))
    ref = _reference(mha, query, key, value)
    assert out.shape == (B, T, C)
    assert jnp.allclose(out, ref, atol=2e-3, rtol=2e-3), \
        float(jnp.max(jnp.abs(out - ref)))

    # bf16 path: MXU-native operands (v6e/v7x), f32 softmax stats / accumulation.
    mha_bf16 = mha.astype(jnp.bfloat16)
    out_bf16 = jax.block_until_ready(
        mha_bf16(query.astype(jnp.bfloat16),
                 key.astype(jnp.bfloat16),
                 value.astype(jnp.bfloat16)))
    assert jnp.allclose(out_bf16.astype(jnp.float32), ref, atol=5e-2, rtol=5e-2), \
        float(jnp.max(jnp.abs(out_bf16.astype(jnp.float32) - ref)))

    print("KERNEL_OK")
</pallas_src>

<mosaic_0001>
module attributes {stable_mosaic.version = 11 : i64} {
  func.func @_head_proj_kernel(%arg0: i32, %arg1: i32, %arg2: i32, %arg3: memref<1x8x32xf32, #tpu.memory_space<vmem>>, %arg4: memref<1x32x8xf32, #tpu.memory_space<vmem>>, %arg5: memref<1x1x8xf32, #tpu.memory_space<vmem>>, %arg6: memref<1x1x8x8xf32, #tpu.memory_space<vmem>>) attributes {dimension_semantics = [#tpu.dimension_semantics<parallel>, #tpu.dimension_semantics<parallel>, #tpu.dimension_semantics<parallel>], iteration_bounds = array<i64: 2, 1, 4>, scalar_prefetch = 0 : i64, scratch_operands = 0 : i64, tpu.core_type = #tpu.core_type<tc>, window_params = [{transform_indices = @transform_0, window_bounds = array<i64: 1, 8, 32>}, {transform_indices = @transform_1, window_bounds = array<i64: 1, 32, 8>}, {transform_indices = @transform_2, window_bounds = array<i64: 1, 1, 8>}, {transform_indices = @transform_3, window_bounds = array<i64: 1, 1, 8, 8>}]} {
    %c0 = arith.constant 0 : index
    %c0_0 = arith.constant 0 : index
    %c0_1 = arith.constant 0 : index
    %0 = vector.load %arg3[%c0, %c0_0, %c0_1] : memref<1x8x32xf32, #tpu.memory_space<vmem>>, vector<1x8x32xf32>
    %1 = vector.shape_cast %0 : vector<1x8x32xf32> to vector<8x32xf32>
    %c0_2 = arith.constant 0 : index
    %c0_3 = arith.constant 0 : index
    %c0_4 = arith.constant 0 : index
    %2 = vector.load %arg4[%c0_2, %c0_3, %c0_4] : memref<1x32x8xf32, #tpu.memory_space<vmem>>, vector<1x32x8xf32>
    %3 = vector.shape_cast %2 : vector<1x32x8xf32> to vector<32x8xf32>
    %cst = arith.constant dense<0.000000e+00> : vector<8x8xf32>
    %4 = tpu.matmul %1, %3, %cst {dimension_numbers = #tpu.dot_dimension_numbers<[1], [0], [0], [1], [0, 0, 1, 1], [], []>} : vector<8x32xf32>, vector<32x8xf32>, vector<8x8xf32> -> vector<8x8xf32>
    %c0_5 = arith.constant 0 : index
    %c0_6 = arith.constant 0 : index
    %c0_7 = arith.constant 0 : index
    %5 = vector.load %arg5[%c0_5, %c0_6, %c0_7] : memref<1x1x8xf32, #tpu.memory_space<vmem>>, vector<1x1x8xf32>
    %6 = vector.shape_cast %5 : vector<1x1x8xf32> to vector<1x8xf32>
    %7 = vector.broadcast %6 : vector<1x8xf32> to vector<8x8xf32>
    %8 = arith.addf %4, %7 : vector<8x8xf32>
    %c0_8 = arith.constant 0 : index
    %c0_9 = arith.constant 0 : index
    %c0_10 = arith.constant 0 : index
    %c0_11 = arith.constant 0 : index
    %9 = vector.load %arg6[%c0_8, %c0_9, %c0_10, %c0_11] : memref<1x1x8x8xf32, #tpu.memory_space<vmem>>, vector<1x1x8x8xf32>
    %10 = vector.shape_cast %9 : vector<1x1x8x8xf32> to vector<8x8xf32>
    %11 = vector.shape_cast %8 : vector<8x8xf32> to vector<1x1x8x8xf32>
    tpu.vector_store %arg6[%c0_8, %c0_9, %c0_10, %c0_11], %11 {strides = array<i32>} : memref<1x1x8x8xf32, #tpu.memory_space<vmem>>, vector<1x1x8x8xf32>,
    return
  }
  func.func @transform_0(%arg0: i32, %arg1: i32, %arg2: i32) -> (i32, i32, i32) {
    %c0_i32 = arith.constant 0 : i32
    %c0_i32_0 = arith.constant 0 : i32
    return %arg0, %arg1, %c0_i32 : i32, i32, i32
  }
  func.func @transform_1(%arg0: i32, %arg1: i32, %arg2: i32) -> (i32, i32, i32) {
    %c0_i32 = arith.constant 0 : i32
    %c0_i32_0 = arith.constant 0 : i32
    %c0_i32_1 = arith.constant 0 : i32
    return %arg2, %c0_i32, %c0_i32_0 : i32, i32, i32
  }
  func.func @transform_2(%arg0: i32, %arg1: i32, %arg2: i32) -> (i32, i32, i32) {
    %c0_i32 = arith.constant 0 : i32
    %c0_i32_0 = arith.constant 0 : i32
    %c0_i32_1 = arith.constant 0 : i32
    return %arg2, %c0_i32, %c0_i32_0 : i32, i32, i32
  }
  func.func @transform_3(%arg0: i32, %arg1: i32, %arg2: i32) -> (i32, i32, i32, i32) {
    %c0_i32 = arith.constant 0 : i32
    %c0_i32_0 = arith.constant 0 : i32
    return %arg0, %arg2, %arg1, %c0_i32 : i32, i32, i32, i32
  }
}

</mosaic_0001>

<llo_original>
// kernel: tpu_custom_call.1
$region0: #{tpu_custom_call.1}
  #allocation0 [shape = 'u32[]', space=smem, size = 0x4, offset = 0x4, fixed_abs, tag = 'smem constant byte address 0x4 - core index']
  #allocation1 [shape = 'u32[144,128]{1,0:T(1,128)}', space=vmem, size = 0x12000, scoped, tag = 'internal scratch']
  %s0 = inlined_call_operand.vmem [shape: f32[2,8,32], index: 0, kind: input, shape index: {}]
  %s1 = inlined_call_operand.vmem [shape: f32[4,32,8], index: 1, kind: input, shape index: {}]
  %s2 = inlined_call_operand.vmem [shape: f32[4,1,8], index: 2, kind: input, shape index: {}]
  %s3 = inlined_call_operand.hbm [shape: f32[2,4,8,8], index: 3, kind: output, shape index: {}]
  %s4 = sld [smem:[#allocation0]]
  $region45: #{tpu_custom_call.1} parent=0
    _
  %s6 = ssub.s32 1, %s4
  %s7 = scalar_select 0, %s6, %s4
  $region1: #{tpu_custom_call.1} parent=0
    #allocation2 [shape = 'u8[8192]{0}', space=vmem, size = 0x2000, scoped, tag = 'output window, operand 0']
    #allocation3 [shape = 's32[2]{0}', space=sflag, size = 0x8, scoped, tag = 'scoped memory for tpu_custom_call.1']
    %8 = vsyncpa [#allocation3], 0
    %s9 = scalar_lea.sflag [#allocation3], 1
    %10 = vsyncpa %s9, 0
    loop: start=0, step=1, limit=10
    $region2: #{tpu_custom_call.1} parent=1 // loop_pre_header
      _
    $region3: #{tpu_custom_call.1} parent=1 // loop_header
      %s12 = sphi 0, %s16
      %p13 = scmp.ge.s32.totalorder %s12, 10
      %s19 = sphi 0, %s38
      %s20 = sphi 0, %s34
      %s21 = sphi 0, %s30
      %s22 = sphi 0, %s19
      %s23 = sphi 0, %s20
      %s24 = sphi 0, %s21
      %s25 = sphi 0, %s22
      %s26 = sphi 0, %s23
      %s27 = sphi 0, %s24
      %s43 = sphi 0, %s45
      %s46 = sphi 0, %s43
      %s47 = sphi 0, %s46
      %s63 = sphi 0, %s47
      %s69 = sphi 0, %s71
      %s72 = sphi 0, %s69
      %s73 = sphi 0, %s72
      %s89 = sphi 0, %s73
      %s95 = sphi 0, %s97
      %s98 = sphi 0, %s95
      %s99 = sphi 0, %s98
      %s115 = sphi 0, %s99
      %s125 = sphi 0, %s127
      %s128 = sphi 0, %s125
      %s129 = sphi 0, %s128
      %s145 = sphi 0, %s129
    $region4: #{tpu_custom_call.1} parent=1 // loop_header_branch
      %15 = sbr.rel (%p13) target = $region8
    $region5: #{tpu_custom_call.1} parent=1 // loop_body
      %s17 = ssub.s32 %s12, 1
      %s18 = ssub.s32 %s12, 2
      %s28 = sadd.s32 1, %s21
      %p29 = scmp.ge.s32.totalorder %s28, 4
      %s30 = scalar_select %p29, 0, %s28
      %s31 = sadd.s32 1, %s20
      %s32 = scalar_select %p29, %s31, %s20
      %p33 = scmp.ge.s32.totalorder %s32, 1
      %s34 = scalar_select %p33, 0, %s32
      %s35 = sadd.s32 1, %s19
      %s36 = scalar_select %p33, %s35, %s19
      %p37 = scmp.ge.s32.totalorder %s36, 2
      %s38 = scalar_select %p37, 0, %s36
      %s39 = ssub.s32 %s19, %s38
      %s40 = ssub.s32 %s20, %s34
      %s41 = sor.u32 %s39, %s40
      %p42 = scmp.eq.s32.totalorder %s41, 0
      %s44 = sadd.s32 %s43, 1
      %s45 = scalar_select %p42, %s43, %s44
      %p48 = pneg %p42
      %p49 = scmp.eq.s32.totalorder %s12, 7
      %p50 = por %p48, %p49
      %p51 = scmp.ne.s32.totalorder %s43, %s46
      %p52 = scmp.eq.s32.totalorder %s12, 0
      %p53 = por %p51, %p52
      %p54 = scmp.ne.s32.totalorder %s43, %s46
      %p55 = scmp.eq.s32.totalorder %s17, 7
      %p56 = por %p54, %p55
      %p57 = scmp.ne.s32.totalorder %s46, %s47
      %p58 = scmp.eq.s32.totalorder %s17, 0
      %p59 = por %p57, %p58
      %p60 = scmp.ne.s32.totalorder %s46, %s47
      %p61 = scmp.eq.s32.totalorder %s18, 7
      %p62 = por %p60, %p61
      %p64 = scmp.ne.s32.totalorder %s47, %s63
      %p65 = scmp.eq.s32.totalorder %s18, 0
      %p66 = por %p64, %p65
      %s67 = ssub.s32 %s21, %s30
      %p68 = scmp.eq.s32.totalorder %s67, 0
      %s70 = sadd.s32 %s69, 1
      %s71 = scalar_select %p68, %s69, %s70
      %p74 = pneg %p68
      %p75 = scmp.eq.s32.totalorder %s12, 7
      %p76 = por %p74, %p75
      %p77 = scmp.ne.s32.totalorder %s69, %s72
      %p78 = scmp.eq.s32.totalorder %s12, 0
      %p79 = por %p77, %p78
      %p80 = scmp.ne.s32.totalorder %s69, %s72
      %p81 = scmp.eq.s32.totalorder %s17, 7
      %p82 = por %p80, %p81
      %p83 = scmp.ne.s32.totalorder %s72, %s73
      %p84 = scmp.eq.s32.totalorder %s17, 0
      %p85 = por %p83, %p84
      %p86 = scmp.ne.s32.totalorder %s72, %s73
      %p87 = scmp.eq.s32.totalorder %s18, 7
      %p88 = por %p86, %p87
      %p90 = scmp.ne.s32.totalorder %s73, %s89
      %p91 = scmp.eq.s32.totalorder %s18, 0
      %p92 = por %p90, %p91
      %s93 = ssub.s32 %s21, %s30
      %p94 = scmp.eq.s32.totalorder %s93, 0
      %s96 = sadd.s32 %s95, 1
      %s97 = scalar_select %p94, %s95, %s96
      %p100 = pneg %p94
      %p101 = scmp.eq.s32.totalorder %s12, 7
      %p102 = por %p100, %p101
      %p103 = scmp.ne.s32.totalorder %s95, %s98
      %p104 = scmp.eq.s32.totalorder %s12, 0
      %p105 = por %p103, %p104
      %p106 = scmp.ne.s32.totalorder %s95, %s98
      %p107 = scmp.eq.s32.totalorder %s17, 7
      %p108 = por %p106, %p107
      %p109 = scmp.ne.s32.totalorder %s98, %s99
      %p110 = scmp.eq.s32.totalorder %s17, 0
      %p111 = por %p109, %p110
      %p112 = scmp.ne.s32.totalorder %s98, %s99
      %p113 = scmp.eq.s32.totalorder %s18, 7
      %p114 = por %p112, %p113
      %p116 = scmp.ne.s32.totalorder %s99, %s115
      %p117 = scmp.eq.s32.totalorder %s18, 0
      %p118 = por %p116, %p117
      %s119 = ssub.s32 %s19, %s38
      %s120 = ssub.s32 %s21, %s30
      %s121 = sor.u32 %s119, %s120
      %s122 = ssub.s32 %s20, %s34
      %s123 = sor.u32 %s121, %s122
      %p124 = scmp.eq.s32.totalorder %s123, 0
      %s126 = sadd.s32 %s125, 1
      %s127 = scalar_select %p124, %s125, %s126
      %p130 = pneg %p124
      %p131 = scmp.eq.s32.totalorder %s12, 7
      %p132 = por %p130, %p131
      %p133 = scmp.ne.s32.totalorder %s125, %s128
      %p134 = scmp.eq.s32.totalorder %s12, 0
      %p135 = por %p133, %p134
      %p136 = scmp.ne.s32.totalorder %s125, %s128
      %p137 = scmp.eq.s32.totalorder %s17, 7
      %p138 = por %p136, %p137
      %p139 = scmp.ne.s32.totalorder %s128, %s129
      %p140 = scmp.eq.s32.totalorder %s17, 0
      %p141 = por %p139, %p140
      %p142 = scmp.ne.s32.totalorder %s128, %s129
      %p143 = scmp.eq.s32.totalorder %s18, 7
      %p144 = por %p142, %p143
      %p146 = scmp.ne.s32.totalorder %s129, %s145
      %p147 = scmp.eq.s32.totalorder %s18, 0
      %p148 = por %p146, %p147
      %p149 = scmp.le.s32.totalorder 1, %s12
      %p150 = scmp.lt.s32.totalorder %s12, 9
      %p151 = pnand %p149, %p150
      %p152 = pneg %p151
      // Predicated region
      $region9: #{tpu_custom_call.1} parent=5 // pred_check
        _
      $region10: #{tpu_custom_call.1} parent=5 // pred_check_branch
        %154 = sbr.rel (%p151) target = $region12
      $region11: #{tpu_custom_call.1} parent=5 // pred_region
        %s155 = ssub.s32 %s12, 1
      $region12: #{tpu_custom_call.1} parent=5 // pred_fallthru
        _
      %p156 = scmp.lt.s32.totalorder %s12, 8
      // Predicated region
      $region13: #{tpu_custom_call.1} parent=5 // pred_check
        %p157 = pneg %p156
      $region14: #{tpu_custom_call.1} parent=5 // pred_check_branch
        %159 = sbr.rel (%p157) target = $region16
      $region15: #{tpu_custom_call.1} parent=5 // pred_region
        // Predicated region
        $region17: #{tpu_custom_call.1} parent=15 // pred_check
          %p160 = pneg %p53
        $region18: #{tpu_custom_call.1} parent=15 // pred_check_branch
          %162 = sbr.rel (%p160) target = $region20
        $region19: #{tpu_custom_call.1} parent=15 // pred_region
          %p163 = scmp.lt.s32.totalorder %s19, 1
          %s164 = scalar_select %p163, %s19, 1
          %p165 = scmp.lt.s32.totalorder %s20, 0
          %s166 = scalar_select %p165, %s20, 0
          %s167 = sadd.s32 %s166, %s164
          %s168 = smul.addr %s167, 8
          %s169 = scalar_lea.vmem %s0, %s168
        $region20: #{tpu_custom_call.1} parent=15 // pred_fallthru
          _
        // Predicated region
        $region21: #{tpu_custom_call.1} parent=15 // pred_check
          %p170 = pneg %p79
        $region22: #{tpu_custom_call.1} parent=15 // pred_check_branch
          %172 = sbr.rel (%p170) target = $region24
        $region23: #{tpu_custom_call.1} parent=15 // pred_region
          %p173 = scmp.lt.s32.totalorder %s21, 3
          %s174 = scalar_select %p173, %s21, 3
          %s175 = smul.addr %s174, 4
          %s176 = smul.addr %s175, 8
          %s177 = scalar_lea.vmem %s1, %s176
        $region24: #{tpu_custom_call.1} parent=15 // pred_fallthru
          _
        // Predicated region
        $region25: #{tpu_custom_call.1} parent=15 // pred_check
          %p178 = pneg %p105
        $region26: #{tpu_custom_call.1} parent=15 // pred_check_branch
          %180 = sbr.rel (%p178) target = $region28
        $region27: #{tpu_custom_call.1} parent=15 // pred_region
          %p181 = scmp.lt.s32.totalorder %s21, 3
          %s182 = scalar_select %p181, %s21, 3
          %s183 = scalar_lea.vmem %s2, %s182
        $region28: #{tpu_custom_call.1} parent=15 // pred_fallthru
          _
      $region16: #{tpu_custom_call.1} parent=5 // pred_fallthru
        _
      %p184 = scmp.le.s32.totalorder 1, %s12
      %p185 = scmp.lt.s32.totalorder %s12, 9
      %p186 = pnand %p184, %p185
      %p187 = pneg %p186
      // Predicated region
      $region29: #{tpu_custom_call.1} parent=5 // pred_check
        _
      $region30: #{tpu_custom_call.1} parent=5 // pred_check_branch
        %189 = sbr.rel (%p186) target = $region32
      $region31: #{tpu_custom_call.1} parent=5 // pred_region
        %s190 = ssub.s32 %s12, 1
        %p191 = scmp.lt.s32.totalorder %s22, 1
        %s192 = scalar_select %p191, %s22, 1
        %p193 = scmp.lt.s32.totalorder %s23, 0
        %s194 = scalar_select %p193, %s23, 0
        %s195 = sadd.s32 %s194, %s192
        %s196 = smul.addr %s195, 8
        %s197 = scalar_lea.vmem %s0, %s196
        %p198 = pneg %p59
        %p199 = pneg %p56
        %p200 = scmp.lt.s32.totalorder %s24, 3
        %s201 = scalar_select %p200, %s24, 3
        %s202 = smul.addr %s201, 4
        %s203 = smul.addr %s202, 8
        %s204 = scalar_lea.vmem %s1, %s203
        %p205 = pneg %p85
        %p206 = pneg %p82
        %p207 = scmp.lt.s32.totalorder %s24, 3
        %s208 = scalar_select %p207, %s24, 3
        %s209 = scalar_lea.vmem %s2, %s208
        %p210 = pneg %p111
        %p211 = pneg %p108
        %p212 = pneg %p141
        %p213 = pneg %p138
        %s214 = sand.u32 %s128, 1
        %s215 = scalar_lea.sflag [#allocation3], %s214
        %s216 = sand.u32 %s128, 1
        %s217 = smul.addr %s216, 8
        %s218 = scalar_lea.vmem [#allocation2], %s217
        %p219 = scmp.lt.s32.totalorder %s22, 1
        %s220 = scalar_select %p219, %s22, 1
        %p221 = scmp.lt.s32.totalorder %s23, 0
        %s222 = scalar_select %p221, %s23, 0
        %s223 = sadd.s32 %s222, %s220
        %s224 = smul.addr %s223, 8
        %s225 = scalar_lea.vmem %s0, %s224
        %p226 = scmp.lt.s32.totalorder %s24, 3
        %s227 = scalar_select %p226, %s24, 3
        %s228 = smul.addr %s227, 4
        %s229 = smul.addr %s228, 8
        %s230 = scalar_lea.vmem %s1, %s229
        %p231 = scmp.lt.s32.totalorder %s24, 3
        %s232 = scalar_select %p231, %s24, 3
        %s233 = scalar_lea.vmem %s2, %s232
        %v234 = vld [vmem:[%s225] sm:$0xff]
        %v235 = vld [vmem:[%s230] sm:$0xff]
        %v236 = vld [vmem:[%s230 + $0x8] sm:$0xff]
        %v237 = vld [vmem:[%s230 + $0x10] sm:$0xff]
        %v238 = vld [vmem:[%s230 + $0x18] sm:$0xff]
        %v239 = vld [vmem:[%s233] sm:$0x1]
        %v241 = vlaneseq
        %v242 = vshrl.u32 %v241, 7
        %v243 = vsub.s32 0, %v242
        %v244 = vrot.slane %v239, %v243
        %vm246 = vcmask 261120
        %v248 = vsel %vm246, %v234, 0
        %250 = vmatprep.subr.mxu0 0.0
        %251 = vmatpush1.msra.mxu0 %v235
        %252 = vmatprep.subr.mxu0 0.0
        %253 = vmatpush1.msra.mxu0 %v236
        %254 = vmatprep.subr.mxu0 0.0
        %255 = vmatpush1.msra.mxu0 %v237
        %256 = vmatprep.subr.mxu0 0.0
        %257 = vmatpush1.msra.mxu0 %v238
        %258 = vmatprep.subr.mxu0 0.0
        %259 = vmatpush1.msra.mxu0 0.0
        %260 = vmatprep.subr.mxu0 0.0
        %261 = vmatpush1.msra.mxu0 0.0
        %262 = vmatprep.subr.mxu0 0.0
        %263 = vmatpush1.msra.mxu0 0.0
        %264 = vmatprep.subr.mxu0 0.0
        %265 = vmatpush1.msra.mxu0 0.0
        %266 = vmatprep.subr.mxu0 0.0
        %267 = vmatpush1.msra.mxu0 0.0
        %268 = vmatprep.subr.mxu0 0.0
        %269 = vmatpush1.msra.mxu0 0.0
        %270 = vmatprep.subr.mxu0 0.0
        %271 = vmatpush1.msra.mxu0 0.0
        %272 = vmatprep.subr.mxu0 0.0
        %273 = vmatpush1.msra.mxu0 0.0
        %274 = vmatprep.subr.mxu0 0.0
        %275 = vmatpush1.msra.mxu0 0.0
        %276 = vmatprep.subr.mxu0 0.0
        %277 = vmatpush1.msra.mxu0 0.0
        %278 = vmatprep.subr.mxu0 0.0
        %279 = vmatpush1.msra.mxu0 0.0
        %280 = vmatprep.subr.mxu0 0.0
        %281 = vmatpush1.msra.mxu0 0.0
        %282 = vmatprep.subr.mxu0 0.0
        %283 = vmatpush1.msra.mxu0 0.0
        %284 = vmatprep.subr.mxu0 0.0
        %285 = vmatpush1.msra.mxu0 0.0
        %286 = vmatprep.subr.mxu0 0.0
        %287 = vmatpush1.msra.mxu0 0.0
        %288 = vmatprep.subr.mxu0 0.0
        %289 = vmatpush1.msra.mxu0 0.0
        %290 = vmatprep.subr.mxu0 0.0
        %291 = vmatpush1.msra.mxu0 0.0
        %292 = vmatprep.subr.mxu0 0.0
        %293 = vmatpush1.msra.mxu0 0.0
        %294 = vmatprep.subr.mxu0 0.0
        %295 = vmatpush1.msra.mxu0 0.0
        %296 = vmatprep.subr.mxu0 0.0
        %297 = vmatpush1.msra.mxu0 0.0
        %298 = vmatprep.subr.mxu0 0.0
        %299 = vmatpush1.msra.mxu0 0.0
        %300 = vmatprep.subr.mxu0 0.0
        %301 = vmatpush1.msra.mxu0 0.0
        %302 = vmatprep.subr.mxu0 0.0
        %303 = vmatpush1.msra.mxu0 0.0
        %304 = vmatprep.subr.mxu0 0.0
        %305 = vmatpush1.msra.mxu0 0.0
        %306 = vmatprep.subr.mxu0 0.0
        %307 = vmatpush1.msra.mxu0 0.0
        %308 = vmatprep.subr.mxu0 0.0
        %309 = vmatpush1.msra.mxu0 0.0
        %310 = vmatprep.subr.mxu0 0.0
        %311 = vmatpush1.msra.mxu0 0.0
        %312 = vmatprep.subr.mxu0 0.0
        %313 = vmatpush1.msra.mxu0 0.0
        %314 = vmatprep.mubr.f32.mxu0 0.0
        %315 = vmatmul.mubr.f32.gmra.mrb[0].mxu0 %v248
        %v316 = vpop.f32.mrb[0].mxu0
        %v317 = vadd.f32 %v244, %v316
        %v318 = vpop.f32.mrb[0].mxu0
        %319 = vdwg.mxu0
        %vm320 = vcmask 64512
        %321 = vst.msk [vmem:[%s218] sm:$0xff] %vm320, %v317
        %s322 = sand.u32 %s128, 1
        %s323 = scalar_lea.sflag [#allocation3], %s322
        %s324 = sand.u32 %s128, 1
        %s325 = smul.addr %s324, 8
        %s326 = scalar_lea.vmem [#allocation2], %s325
        // Predicated region
        $region33: #{tpu_custom_call.1} parent=31 // pred_check
          %p327 = pneg %p138
        $region34: #{tpu_custom_call.1} parent=31 // pred_check_branch
          %329 = sbr.rel (%p327) target = $region36
        $region35: #{tpu_custom_call.1} parent=31 // pred_region
          %s331 = ssub.s32 128, 128
          %332 = vsyncadd %s323, %s331
          %s333 = sadd.s32 %s23, %s24
          %s334 = smul.addr %s22, 4
          %s335 = sadd.s32 %s333, %s334
          %s336 = smul.addr %s335, 128
          %s337 = scalar_lea.hbm %s3, %s336
          %s339 = sshll.u32 %s326, 4
          %s340 = int_to_ptr.vmem [resolvable:$true] %s339
          %342 = dma.vmem_to_hbm [thread:$0]  %s340, 128, %s337, %s323
        $region36: #{tpu_custom_call.1} parent=31 // pred_fallthru
          _
      $region32: #{tpu_custom_call.1} parent=5 // pred_fallthru
        _
      %p343 = scmp.le.s32.totalorder 2, %s12
      // Predicated region
      $region37: #{tpu_custom_call.1} parent=5 // pred_check
        %p344 = pneg %p343
      $region38: #{tpu_custom_call.1} parent=5 // pred_check_branch
        %346 = sbr.rel (%p344) target = $region40
      $region39: #{tpu_custom_call.1} parent=5 // pred_region
        %s347 = ssub.s32 %s12, 2
        // Predicated region
        $region41: #{tpu_custom_call.1} parent=39 // pred_check
          %p348 = pneg %p144
        $region42: #{tpu_custom_call.1} parent=39 // pred_check_branch
          %350 = sbr.rel (%p348) target = $region44
        $region43: #{tpu_custom_call.1} parent=39 // pred_region
          %s351 = sand.u32 %s129, 1
          %s352 = scalar_lea.sflag [#allocation3], %s351
          %s353 = sand.u32 %s129, 1
          %s354 = smul.addr %s353, 8
          %s355 = scalar_lea.vmem [#allocation2], %s354
          %356 = dma.done %s352, 128
        $region44: #{tpu_custom_call.1} parent=39 // pred_fallthru
          _
      $region40: #{tpu_custom_call.1} parent=5 // pred_fallthru
        _
    $region6: #{tpu_custom_call.1} parent=1 // loop_footer
      %s16 = sadd.s32 1, %s12
    $region7: #{tpu_custom_call.1} parent=1 // loop_footer_branch
      %11 = sbr.rel target = $region3
    $region8: #{tpu_custom_call.1} parent=1 // loop_exit
      _
    %357 = vsyncpa [#allocation3], 1
    %s358 = scalar_lea.sflag [#allocation3], 1
    %359 = vsyncpa %s358, 1

</llo_original>
